<compile_context>
chip_gen: v5e
topology: v5e:2x2
jax: 0.10.0
libtpu: 0.0.40
codegen_flags: <defaults>
</compile_context>

<pallas_src>
import functools

import jax
import jax.numpy as jnp
from jax.experimental import pallas as pl
from jax.experimental.pallas import tpu as pltpu

IN_FEATURES = 28 * 28      # 784
HIDDEN = 128
OUT_FEATURES = 10
OUT_PAD = 128              # lane-dense output width (avoids masked vst.msk)


def _round_up(x, m):
    return ((x + m - 1) // m) * m


def _mlp_kernel(x_ref, w1_ref, b1_ref, w2_ref, b2_ref, out_ref):
    """out = relu(x @ W1 + b1) @ W2 + b2 for one (tb, 784) batch tile.

    x arrives f32 straight from HBM; the bf16 cast for the MXU happens here.
    Accumulation and the bias/ReLU epilogue are f32 (VPU); the 128-lane padded
    output block is stored as bf16 (dense full-lane store).
    """
    x = x_ref[...].astype(jnp.bfloat16)

    # fc1 (MXU, f32 accumulate) + bias + ReLU (f32 epilogue).
    h = jnp.dot(x, w1_ref[...], preferred_element_type=jnp.float32)
    h = jnp.maximum(h + b1_ref[...], 0.0)

    # fc2 (MXU, f32 accumulate) + bias; padded output columns are exact zeros
    # from the zero-padded w2/b2 and get sliced away in the wrapper.
    out = jnp.dot(h.astype(jnp.bfloat16), w2_ref[...],
                  preferred_element_type=jnp.float32)
    out_ref[...] = (out + b2_ref[...]).astype(out_ref.dtype)


@functools.partial(jax.jit, static_argnames=("tile_b", "core_parallel"))
def simple_nn_forward(x_nchw, w1, b1, w2, b2, tile_b=2048, core_parallel=True):
    """SimpleNN forward.

    x_nchw: (B, 1, 28, 28) f32
    w1: (784, 128), b1: (128,), w2: (128, 10), b2: (10,)
        (weights stored transposed vs PyTorch (out,in) so the kernel does x @ W)
    Returns logits (B, 10) f32.
    """
    B = x_nchw.shape[0]

    # nn.Flatten on NCHW == row-major reshape to (B, 784).  No pad/cast pass:
    # the kernel streams these f32 rows directly and casts to bf16 on-chip.
    x_flat = x_nchw.reshape(B, IN_FEATURES).astype(jnp.float32)

    # Batch tile: aim for >= 2 grid steps (so CORE_PARALLEL can span both TCs
    # on v7x), multiple of 16 (bf16 output sublane packing), capped at tile_b.
    tb = min(tile_b, _round_up(-(-B // 2), 16))
    b_pad = _round_up(B, tb)
    x_p = jnp.pad(x_flat, ((0, b_pad - B), (0, 0)))        # batch-only zero pad

    # One-time tiny weight prep (layout only): bf16 MXU operands, fc2 weights
    # and bias zero-padded to 128 output lanes for dense stores.
    w1_b = w1.astype(jnp.bfloat16)                                      # (784,128)
    w2_p = jnp.zeros((HIDDEN, OUT_PAD), jnp.bfloat16).at[:, :OUT_FEATURES].set(
        w2.astype(jnp.bfloat16))
    b1_p = b1.reshape(1, HIDDEN).astype(jnp.float32)
    b2_p = jnp.zeros((1, OUT_PAD), jnp.float32).at[:, :OUT_FEATURES].set(
        b2.reshape(1, OUT_FEATURES).astype(jnp.float32))

    grid = (b_pad // tb,)

    # VMEM budget: double-buffered x/out tiles + resident weights + f32
    # intermediates, plus headroom.  ~16 MiB at tb=2048 -> safe on v7x (64 MiB).
    vmem_bytes = (
        2 * tb * IN_FEATURES * 4                              # x tiles (f32, 2 bufs)
        + 2 * tb * OUT_PAD * 2                                # out tiles (bf16, 2 bufs)
        + tb * (HIDDEN + OUT_PAD) * 4                         # h / pre-store f32
        + 2 * (IN_FEATURES * HIDDEN + HIDDEN * OUT_PAD) * 2   # weights
        + 2 * (HIDDEN + OUT_PAD) * 4                          # biases
    )
    vmem_limit = min(int(vmem_bytes * 1.5) + (8 << 20), 100 << 20)

    cost = pl.CostEstimate(
        flops=2 * b_pad * (IN_FEATURES * HIDDEN + HIDDEN * OUT_PAD),
        transcendentals=0,
        bytes_accessed=(x_p.size * 4 + w1_b.size * 2 + w2_p.size * 2
                        + b1_p.size * 4 + b2_p.size * 4
                        + b_pad * OUT_PAD * 2),
    )

    batch_sem = pltpu.CORE_PARALLEL if core_parallel else "parallel"

    out_padded = pl.pallas_call(
        _mlp_kernel,
        out_shape=jax.ShapeDtypeStruct((b_pad, OUT_PAD), jnp.bfloat16),
        grid=grid,
        in_specs=[
            # x: streamed per batch tile (f32); last block dim == full array
            # dim (784), so no K padding is needed.
            pl.BlockSpec((tb, IN_FEATURES), lambda i: (i, 0)),
            pl.BlockSpec((IN_FEATURES, HIDDEN), lambda i: (0, 0)),   # w1: resident
            pl.BlockSpec((1, HIDDEN), lambda i: (0, 0)),             # b1: resident
            pl.BlockSpec((HIDDEN, OUT_PAD), lambda i: (0, 0)),       # w2: resident
            pl.BlockSpec((1, OUT_PAD), lambda i: (0, 0)),            # b2: resident
        ],
        out_specs=pl.BlockSpec((tb, OUT_PAD), lambda i: (i, 0)),
        compiler_params=pltpu.CompilerParams(
            dimension_semantics=(batch_sem,),
            vmem_limit_bytes=vmem_limit,
        ),
        cost_estimate=cost,
    )(x_p, w1_b, b1_p, w2_p, b2_p)

    # Drop batch padding + padded output lanes; upcast the valid logits to f32
    # to match the PyTorch reference interface (tiny, plain-XLA glue).
    return out_padded[:B, :OUT_FEATURES].astype(jnp.float32)


def _reference_forward(x_nchw, w1, b1, w2, b2):
    """Pure-JAX f32 reference matching PyTorch semantics."""
    x = x_nchw.reshape(x_nchw.shape[0], -1)
    h = jnp.maximum(x @ w1 + b1, 0.0)
    return h @ w2 + b2


if __name__ == "__main__":
    key = jax.random.PRNGKey(0)
    k_x, k_w1, k_b1, k_w2, k_b2 = jax.random.split(key, 5)

    B = 20  # deliberately not a multiple of the tile -> exercises batch padding

    # Deterministic synthetic inputs/params (shapes from SimpleNN.__init__).
    # Weights stored as (in_features, out_features), i.e. transposed vs PyTorch,
    # so the kernel computes x @ W (same math as x @ W_pt.T).
    x = jax.random.normal(k_x, (B, 1, 28, 28), dtype=jnp.float32)
    w1 = jax.random.normal(k_w1, (IN_FEATURES, HIDDEN), dtype=jnp.float32) * 0.02
    b1 = jax.random.normal(k_b1, (HIDDEN,), dtype=jnp.float32) * 0.01
    w2 = jax.random.normal(k_w2, (HIDDEN, OUT_FEATURES), dtype=jnp.float32) * 0.02
    b2 = jax.random.normal(k_b2, (OUT_FEATURES,), dtype=jnp.float32) * 0.01

    ref = _reference_forward(x, w1, b1, w2, b2)

    def run_and_check(core_parallel):
        # Small batch tile so the grid has >1 step (20 -> 2 tiles of 16).
        out = simple_nn_forward(x, w1, b1, w2, b2, tile_b=16,
                                core_parallel=core_parallel)
        out = jax.block_until_ready(out)
        assert out.shape == (B, OUT_FEATURES), out.shape
        # bf16 MXU operands / bf16 output store with f32 accumulation ->
        # loosened tolerance vs the f32 reference.
        assert jnp.allclose(out, ref, atol=5e-2, rtol=5e-2), "mismatch vs reference"
        return out

    try:
        run_and_check(core_parallel=True)     # spans both TCs on v7x
    except Exception:
        # Chip / JAX combo without core-parallel grid support: single-TC path.
        run_and_check(core_parallel=False)

    print("KERNEL_OK")
</pallas_src>

<mosaic_0001>
module attributes {stable_mosaic.version = 11 : i64} {
  func.func @_mlp_kernel(%arg0: i32, %arg1: memref<16x784xf32, #tpu.memory_space<vmem>>, %arg2: memref<784x128xbf16, #tpu.memory_space<vmem>>, %arg3: memref<1x128xf32, #tpu.memory_space<vmem>>, %arg4: memref<128x128xbf16, #tpu.memory_space<vmem>>, %arg5: memref<1x128xf32, #tpu.memory_space<vmem>>, %arg6: memref<16x128xbf16, #tpu.memory_space<vmem>>) attributes {dimension_semantics = [#tpu.dimension_semantics<core_parallel>], iteration_bounds = array<i64: 2>, scalar_prefetch = 0 : i64, scratch_operands = 0 : i64, tpu.core_type = #tpu.core_type<tc>, window_params = [{transform_indices = @transform_0, window_bounds = array<i64: 16, 784>}, {pipeline_mode = #tpu.pipeline_mode<synchronous>, transform_indices = @transform_1, window_bounds = array<i64: 784, 128>}, {pipeline_mode = #tpu.pipeline_mode<synchronous>, transform_indices = @transform_2, window_bounds = array<i64: 1, 128>}, {pipeline_mode = #tpu.pipeline_mode<synchronous>, transform_indices = @transform_3, window_bounds = array<i64: 128, 128>}, {pipeline_mode = #tpu.pipeline_mode<synchronous>, transform_indices = @transform_4, window_bounds = array<i64: 1, 128>}, {transform_indices = @transform_5, window_bounds = array<i64: 16, 128>}]} {
    %c0 = arith.constant 0 : index
    %c0_0 = arith.constant 0 : index
    %0 = vector.load %arg1[%c0, %c0_0] : memref<16x784xf32, #tpu.memory_space<vmem>>, vector<16x784xf32>
    %1 = arith.truncf %0 : vector<16x784xf32> to vector<16x784xbf16>
    %c0_1 = arith.constant 0 : index
    %c0_2 = arith.constant 0 : index
    %2 = vector.load %arg2[%c0_1, %c0_2] : memref<784x128xbf16, #tpu.memory_space<vmem>>, vector<784x128xbf16>
    %cst = arith.constant dense<0.000000e+00> : vector<16x128xf32>
    %3 = tpu.matmul %1, %2, %cst {dimension_numbers = #tpu.dot_dimension_numbers<[1], [0], [0], [1], [0, 0, 1, 1], [], []>} : vector<16x784xbf16>, vector<784x128xbf16>, vector<16x128xf32> -> vector<16x128xf32>
    %c0_3 = arith.constant 0 : index
    %c0_4 = arith.constant 0 : index
    %4 = vector.load %arg3[%c0_3, %c0_4] : memref<1x128xf32, #tpu.memory_space<vmem>>, vector<1x128xf32>
    %5 = vector.broadcast %4 : vector<1x128xf32> to vector<16x128xf32>
    %6 = arith.addf %3, %5 : vector<16x128xf32>
    %cst_5 = arith.constant 0.000000e+00 : f32
    %7 = vector.broadcast %cst_5 : f32 to vector<16x128xf32>
    %8 = arith.maximumf %6, %7 : vector<16x128xf32>
    %9 = arith.truncf %8 : vector<16x128xf32> to vector<16x128xbf16>
    %c0_6 = arith.constant 0 : index
    %c0_7 = arith.constant 0 : index
    %10 = vector.load %arg4[%c0_6, %c0_7] : memref<128x128xbf16, #tpu.memory_space<vmem>>, vector<128x128xbf16>
    %cst_8 = arith.constant dense<0.000000e+00> : vector<16x128xf32>
    %11 = tpu.matmul %9, %10, %cst_8 {dimension_numbers = #tpu.dot_dimension_numbers<[1], [0], [0], [1], [0, 0, 1, 1], [], []>} : vector<16x128xbf16>, vector<128x128xbf16>, vector<16x128xf32> -> vector<16x128xf32>
    %c0_9 = arith.constant 0 : index
    %c0_10 = arith.constant 0 : index
    %12 = vector.load %arg5[%c0_9, %c0_10] : memref<1x128xf32, #tpu.memory_space<vmem>>, vector<1x128xf32>
    %13 = vector.broadcast %12 : vector<1x128xf32> to vector<16x128xf32>
    %14 = arith.addf %11, %13 : vector<16x128xf32>
    %15 = arith.truncf %14 : vector<16x128xf32> to vector<16x128xbf16>
    %c0_11 = arith.constant 0 : index
    %c0_12 = arith.constant 0 : index
    %16 = vector.load %arg6[%c0_11, %c0_12] : memref<16x128xbf16, #tpu.memory_space<vmem>>, vector<16x128xbf16>
    tpu.vector_store %arg6[%c0_11, %c0_12], %15 {strides = array<i32>} : memref<16x128xbf16, #tpu.memory_space<vmem>>, vector<16x128xbf16>,
    return
  }
  func.func @transform_0(%arg0: i32) -> (i32, i32) {
    %c0_i32 = arith.constant 0 : i32
    %c0_i32_0 = arith.constant 0 : i32
    return %arg0, %c0_i32 : i32, i32
  }
  func.func @transform_1(%arg0: i32) -> (i32, i32) {
    %c0_i32 = arith.constant 0 : i32
    %c0_i32_0 = arith.constant 0 : i32
    %c0_i32_1 = arith.constant 0 : i32
    return %c0_i32, %c0_i32_0 : i32, i32
  }
  func.func @transform_2(%arg0: i32) -> (i32, i32) {
    %c0_i32 = arith.constant 0 : i32
    %c0_i32_0 = arith.constant 0 : i32
    %c0_i32_1 = arith.constant 0 : i32
    return %c0_i32, %c0_i32_0 : i32, i32
  }
  func.func @transform_3(%arg0: i32) -> (i32, i32) {
    %c0_i32 = arith.constant 0 : i32
    %c0_i32_0 = arith.constant 0 : i32
    %c0_i32_1 = arith.constant 0 : i32
    return %c0_i32, %c0_i32_0 : i32, i32
  }
  func.func @transform_4(%arg0: i32) -> (i32, i32) {
    %c0_i32 = arith.constant 0 : i32
    %c0_i32_0 = arith.constant 0 : i32
    %c0_i32_1 = arith.constant 0 : i32
    return %c0_i32, %c0_i32_0 : i32, i32
  }
  func.func @transform_5(%arg0: i32) -> (i32, i32) {
    %c0_i32 = arith.constant 0 : i32
    %c0_i32_0 = arith.constant 0 : i32
    return %arg0, %c0_i32 : i32, i32
  }
}

module attributes {stable_mosaic.version = 11 : i64} {
  func.func @_mlp_kernel(%arg0: i32, %arg1: memref<16x784xf32, #tpu.memory_space<vmem>>, %arg2: memref<784x128xbf16, #tpu.memory_space<vmem>>, %arg3: memref<1x128xf32, #tpu.memory_space<vmem>>, %arg4: memref<128x128xbf16, #tpu.memory_space<vmem>>, %arg5: memref<1x128xf32, #tpu.memory_space<vmem>>, %arg6: memref<16x128xbf16, #tpu.memory_space<vmem>>) attributes {dimension_semantics = [#tpu.dimension_semantics<parallel>], iteration_bounds = array<i64: 2>, scalar_prefetch = 0 : i64, scratch_operands = 0 : i64, tpu.core_type = #tpu.core_type<tc>, window_params = [{transform_indices = @transform_0, window_bounds = array<i64: 16, 784>}, {pipeline_mode = #tpu.pipeline_mode<synchronous>, transform_indices = @transform_1, window_bounds = array<i64: 784, 128>}, {pipeline_mode = #tpu.pipeline_mode<synchronous>, transform_indices = @transform_2, window_bounds = array<i64: 1, 128>}, {pipeline_mode = #tpu.pipeline_mode<synchronous>, transform_indices = @transform_3, window_bounds = array<i64: 128, 128>}, {pipeline_mode = #tpu.pipeline_mode<synchronous>, transform_indices = @transform_4, window_bounds = array<i64: 1, 128>}, {transform_indices = @transform_5, window_bounds = array<i64: 16, 128>}]} {
    %c0 = arith.constant 0 : index
    %c0_0 = arith.constant 0 : index
    %0 = vector.load %arg1[%c0, %c0_0] : memref<16x784xf32, #tpu.memory_space<vmem>>, vector<16x784xf32>
    %1 = arith.truncf %0 : vector<16x784xf32> to vector<16x784xbf16>
    %c0_1 = arith.constant 0 : index
    %c0_2 = arith.constant 0 : index
    %2 = vector.load %arg2[%c0_1, %c0_2] : memref<784x128xbf16, #tpu.memory_space<vmem>>, vector<784x128xbf16>
    %cst = arith.constant dense<0.000000e+00> : vector<16x128xf32>
    %3 = tpu.matmul %1, %2, %cst {dimension_numbers = #tpu.dot_dimension_numbers<[1], [0], [0], [1], [0, 0, 1, 1], [], []>} : vector<16x784xbf16>, vector<784x128xbf16>, vector<16x128xf32> -> vector<16x128xf32>
    %c0_3 = arith.constant 0 : index
    %c0_4 = arith.constant 0 : index
    %4 = vector.load %arg3[%c0_3, %c0_4] : memref<1x128xf32, #tpu.memory_space<vmem>>, vector<1x128xf32>
    %5 = vector.broadcast %4 : vector<1x128xf32> to vector<16x128xf32>
    %6 = arith.addf %3, %5 : vector<16x128xf32>
    %cst_5 = arith.constant 0.000000e+00 : f32
    %7 = vector.broadcast %cst_5 : f32 to vector<16x128xf32>
    %8 = arith.maximumf %6, %7 : vector<16x128xf32>
    %9 = arith.truncf %8 : vector<16x128xf32> to vector<16x128xbf16>
    %c0_6 = arith.constant 0 : index
    %c0_7 = arith.constant 0 : index
    %10 = vector.load %arg4[%c0_6, %c0_7] : memref<128x128xbf16, #tpu.memory_space<vmem>>, vector<128x128xbf16>
    %cst_8 = arith.constant dense<0.000000e+00> : vector<16x128xf32>
    %11 = tpu.matmul %9, %10, %cst_8 {dimension_numbers = #tpu.dot_dimension_numbers<[1], [0], [0], [1], [0, 0, 1, 1], [], []>} : vector<16x128xbf16>, vector<128x128xbf16>, vector<16x128xf32> -> vector<16x128xf32>
    %c0_9 = arith.constant 0 : index
    %c0_10 = arith.constant 0 : index
    %12 = vector.load %arg5[%c0_9, %c0_10] : memref<1x128xf32, #tpu.memory_space<vmem>>, vector<1x128xf32>
    %13 = vector.broadcast %12 : vector<1x128xf32> to vector<16x128xf32>
    %14 = arith.addf %11, %13 : vector<16x128xf32>
    %15 = arith.truncf %14 : vector<16x128xf32> to vector<16x128xbf16>
    %c0_11 = arith.constant 0 : index
    %c0_12 = arith.constant 0 : index
    %16 = vector.load %arg6[%c0_11, %c0_12] : memref<16x128xbf16, #tpu.memory_space<vmem>>, vector<16x128xbf16>
    tpu.vector_store %arg6[%c0_11, %c0_12], %15 {strides = array<i32>} : memref<16x128xbf16, #tpu.memory_space<vmem>>, vector<16x128xbf16>,
    return
  }
  func.func @transform_0(%arg0: i32) -> (i32, i32) {
    %c0_i32 = arith.constant 0 : i32
    %c0_i32_0 = arith.constant 0 : i32
    return %arg0, %c0_i32 : i32, i32
  }
  func.func @transform_1(%arg0: i32) -> (i32, i32) {
    %c0_i32 = arith.constant 0 : i32
    %c0_i32_0 = arith.constant 0 : i32
    %c0_i32_1 = arith.constant 0 : i32
    return %c0_i32, %c0_i32_0 : i32, i32
  }
  func.func @transform_2(%arg0: i32) -> (i32, i32) {
    %c0_i32 = arith.constant 0 : i32
    %c0_i32_0 = arith.constant 0 : i32
    %c0_i32_1 = arith.constant 0 : i32
    return %c0_i32, %c0_i32_0 : i32, i32
  }
  func.func @transform_3(%arg0: i32) -> (i32, i32) {
    %c0_i32 = arith.constant 0 : i32
    %c0_i32_0 = arith.constant 0 : i32
    %c0_i32_1 = arith.constant 0 : i32
    return %c0_i32, %c0_i32_0 : i32, i32
  }
  func.func @transform_4(%arg0: i32) -> (i32, i32) {
    %c0_i32 = arith.constant 0 : i32
    %c0_i32_0 = arith.constant 0 : i32
    %c0_i32_1 = arith.constant 0 : i32
    return %c0_i32, %c0_i32_0 : i32, i32
  }
  func.func @transform_5(%arg0: i32) -> (i32, i32) {
    %c0_i32 = arith.constant 0 : i32
    %c0_i32_0 = arith.constant 0 : i32
    return %arg0, %c0_i32 : i32, i32
  }
}

</mosaic_0001>

<llo_original>
// kernel: simple_nn_forward.1
$region0: #{simple_nn_forward.1}
  #allocation0 [shape = 'u32[]', space=smem, size = 0x4, offset = 0x4, fixed_abs, tag = 'smem constant byte address 0x4 - core index']
  #allocation1 [shape = 'u32[72,128]{1,0:T(1,128)}', space=vmem, size = 0x9000, scoped, tag = 'internal scratch']
  %s0 = inlined_call_operand.vmem [shape: f32[32,784], index: 0, kind: input, shape index: {}]
  %s1 = inlined_call_operand.vmem [shape: bf16[784,128], index: 1, kind: input, shape index: {}]
  %s2 = inlined_call_operand.vmem [shape: f32[1,128], index: 2, kind: input, shape index: {}]
  %s3 = inlined_call_operand.vmem [shape: bf16[128,128], index: 3, kind: input, shape index: {}]
  %s4 = inlined_call_operand.vmem [shape: f32[1,128], index: 4, kind: input, shape index: {}]
  %s5 = inlined_call_operand.vmem [shape: bf16[32,128], index: 5, kind: output, shape index: {}]
  %s6 = sld [smem:[#allocation0]]
  $region53: #{simple_nn_forward.1} parent=0
    _
  %s8 = ssub.s32 1, %s6
  %s9 = scalar_select 0, %s8, %s6
  loop: start=0, step=1, limit=4
  $region2: #{simple_nn_forward.1} parent=0 // loop_pre_header
    _
  $region3: #{simple_nn_forward.1} parent=0 // loop_header
    %s11 = sphi 0, %s15
    %p12 = scmp.ge.s32.totalorder %s11, 4
    %s21 = sphi 0, %s23
    %s24 = sphi 0, %s21
    %s25 = sphi 0, %s24
    %s41 = sphi 0, %s25
    %s45 = sphi 0, %s45
    %s47 = sphi 0, %s45
    %s48 = sphi 0, %s47
    %s62 = sphi 0, %s48
    %s66 = sphi 0, %s66
    %s68 = sphi 0, %s66
    %s69 = sphi 0, %s68
    %s83 = sphi 0, %s69
    %s87 = sphi 0, %s87
    %s89 = sphi 0, %s87
    %s90 = sphi 0, %s89
    %s104 = sphi 0, %s90
    %s108 = sphi 0, %s108
    %s110 = sphi 0, %s108
    %s111 = sphi 0, %s110
    %s125 = sphi 0, %s111
    %s131 = sphi 0, %s133
    %s134 = sphi 0, %s131
    %s135 = sphi 0, %s134
    %s151 = sphi 0, %s135
  $region4: #{simple_nn_forward.1} parent=0 // loop_header_branch
    %14 = sbr.rel (%p12) target = $region8
  $region5: #{simple_nn_forward.1} parent=0 // loop_body
    %s16 = ssub.s32 %s11, 1
    %s17 = ssub.s32 %s11, 2
    %s18 = sadd.s32 %s11, 1
    %s19 = ssub.s32 %s11, %s18
    %p20 = scmp.eq.s32.totalorder %s19, 0
    %s22 = sadd.s32 %s21, 1
    %s23 = scalar_select %p20, %s21, %s22
    %p26 = pneg %p20
    %p27 = scmp.eq.s32.totalorder %s11, 1
    %p28 = por %p26, %p27
    %p29 = scmp.ne.s32.totalorder %s21, %s24
    %p30 = scmp.eq.s32.totalorder %s11, 0
    %p31 = por %p29, %p30
    %p32 = scmp.ne.s32.totalorder %s21, %s24
    %p33 = scmp.eq.s32.totalorder %s16, 1
    %p34 = por %p32, %p33
    %p35 = scmp.ne.s32.totalorder %s24, %s25
    %p36 = scmp.eq.s32.totalorder %s16, 0
    %p37 = por %p35, %p36
    %p38 = scmp.ne.s32.totalorder %s24, %s25
    %p39 = scmp.eq.s32.totalorder %s17, 1
    %p40 = por %p38, %p39
    %p42 = scmp.ne.s32.totalorder %s25, %s41
    %p43 = scmp.eq.s32.totalorder %s17, 0
    %p44 = por %p42, %p43
    %s46 = sadd.s32 %s45, 1
    %p49 = scmp.eq.s32.totalorder %s11, 1
    %p50 = scmp.ne.s32.totalorder %s45, %s47
    %p51 = scmp.eq.s32.totalorder %s11, 0
    %p52 = por %p50, %p51
    %p53 = scmp.ne.s32.totalorder %s45, %s47
    %p54 = scmp.eq.s32.totalorder %s16, 1
    %p55 = por %p53, %p54
    %p56 = scmp.ne.s32.totalorder %s47, %s48
    %p57 = scmp.eq.s32.totalorder %s16, 0
    %p58 = por %p56, %p57
    %p59 = scmp.ne.s32.totalorder %s47, %s48
    %p60 = scmp.eq.s32.totalorder %s17, 1
    %p61 = por %p59, %p60
    %p63 = scmp.ne.s32.totalorder %s48, %s62
    %p64 = scmp.eq.s32.totalorder %s17, 0
    %p65 = por %p63, %p64
    %s67 = sadd.s32 %s66, 1
    %p70 = scmp.eq.s32.totalorder %s11, 1
    %p71 = scmp.ne.s32.totalorder %s66, %s68
    %p72 = scmp.eq.s32.totalorder %s11, 0
    %p73 = por %p71, %p72
    %p74 = scmp.ne.s32.totalorder %s66, %s68
    %p75 = scmp.eq.s32.totalorder %s16, 1
    %p76 = por %p74, %p75
    %p77 = scmp.ne.s32.totalorder %s68, %s69
    %p78 = scmp.eq.s32.totalorder %s16, 0
    %p79 = por %p77, %p78
    %p80 = scmp.ne.s32.totalorder %s68, %s69
    %p81 = scmp.eq.s32.totalorder %s17, 1
    %p82 = por %p80, %p81
    %p84 = scmp.ne.s32.totalorder %s69, %s83
    %p85 = scmp.eq.s32.totalorder %s17, 0
    %p86 = por %p84, %p85
    %s88 = sadd.s32 %s87, 1
    %p91 = scmp.eq.s32.totalorder %s11, 1
    %p92 = scmp.ne.s32.totalorder %s87, %s89
    %p93 = scmp.eq.s32.totalorder %s11, 0
    %p94 = por %p92, %p93
    %p95 = scmp.ne.s32.totalorder %s87, %s89
    %p96 = scmp.eq.s32.totalorder %s16, 1
    %p97 = por %p95, %p96
    %p98 = scmp.ne.s32.totalorder %s89, %s90
    %p99 = scmp.eq.s32.totalorder %s16, 0
    %p100 = por %p98, %p99
    %p101 = scmp.ne.s32.totalorder %s89, %s90
    %p102 = scmp.eq.s32.totalorder %s17, 1
    %p103 = por %p101, %p102
    %p105 = scmp.ne.s32.totalorder %s90, %s104
    %p106 = scmp.eq.s32.totalorder %s17, 0
    %p107 = por %p105, %p106
    %s109 = sadd.s32 %s108, 1
    %p112 = scmp.eq.s32.totalorder %s11, 1
    %p113 = scmp.ne.s32.totalorder %s108, %s110
    %p114 = scmp.eq.s32.totalorder %s11, 0
    %p115 = por %p113, %p114
    %p116 = scmp.ne.s32.totalorder %s108, %s110
    %p117 = scmp.eq.s32.totalorder %s16, 1
    %p118 = por %p116, %p117
    %p119 = scmp.ne.s32.totalorder %s110, %s111
    %p120 = scmp.eq.s32.totalorder %s16, 0
    %p121 = por %p119, %p120
    %p122 = scmp.ne.s32.totalorder %s110, %s111
    %p123 = scmp.eq.s32.totalorder %s17, 1
    %p124 = por %p122, %p123
    %p126 = scmp.ne.s32.totalorder %s111, %s125
    %p127 = scmp.eq.s32.totalorder %s17, 0
    %p128 = por %p126, %p127
    %s129 = ssub.s32 %s11, %s18
    %p130 = scmp.eq.s32.totalorder %s129, 0
    %s132 = sadd.s32 %s131, 1
    %s133 = scalar_select %p130, %s131, %s132
    %p136 = pneg %p130
    %p137 = scmp.eq.s32.totalorder %s11, 1
    %p138 = por %p136, %p137
    %p139 = scmp.ne.s32.totalorder %s131, %s134
    %p140 = scmp.eq.s32.totalorder %s11, 0
    %p141 = por %p139, %p140
    %p142 = scmp.ne.s32.totalorder %s131, %s134
    %p143 = scmp.eq.s32.totalorder %s16, 1
    %p144 = por %p142, %p143
    %p145 = scmp.ne.s32.totalorder %s134, %s135
    %p146 = scmp.eq.s32.totalorder %s16, 0
    %p147 = por %p145, %p146
    %p148 = scmp.ne.s32.totalorder %s134, %s135
    %p149 = scmp.eq.s32.totalorder %s17, 1
    %p150 = por %p148, %p149
    %p152 = scmp.ne.s32.totalorder %s135, %s151
    %p153 = scmp.eq.s32.totalorder %s17, 0
    %p154 = por %p152, %p153
    %p155 = scmp.le.s32.totalorder 1, %s11
    %p156 = scmp.lt.s32.totalorder %s11, 3
    %p157 = pnand %p155, %p156
    %p158 = pneg %p157
    // Predicated region
    $region9: #{simple_nn_forward.1} parent=5 // pred_check
      _
    $region10: #{simple_nn_forward.1} parent=5 // pred_check_branch
      %160 = sbr.rel (%p157) target = $region12
    $region11: #{simple_nn_forward.1} parent=5 // pred_region
      %s161 = ssub.s32 %s11, 1
      // Predicated region
      $region13: #{simple_nn_forward.1} parent=11 // pred_check
        %p162 = pneg %p58
      $region14: #{simple_nn_forward.1} parent=11 // pred_check_branch
        %164 = sbr.rel (%p162) target = $region16
      $region15: #{simple_nn_forward.1} parent=11 // pred_region
        _
      $region16: #{simple_nn_forward.1} parent=11 // pred_fallthru
        _
      // Predicated region
      $region17: #{simple_nn_forward.1} parent=11 // pred_check
        %p165 = pneg %p79
      $region18: #{simple_nn_forward.1} parent=11 // pred_check_branch
        %167 = sbr.rel (%p165) target = $region20
      $region19: #{simple_nn_forward.1} parent=11 // pred_region
        _
      $region20: #{simple_nn_forward.1} parent=11 // pred_fallthru
        _
      // Predicated region
      $region21: #{simple_nn_forward.1} parent=11 // pred_check
        %p168 = pneg %p100
      $region22: #{simple_nn_forward.1} parent=11 // pred_check_branch
        %170 = sbr.rel (%p168) target = $region24
      $region23: #{simple_nn_forward.1} parent=11 // pred_region
        _
      $region24: #{simple_nn_forward.1} parent=11 // pred_fallthru
        _
      // Predicated region
      $region25: #{simple_nn_forward.1} parent=11 // pred_check
        %p171 = pneg %p121
      $region26: #{simple_nn_forward.1} parent=11 // pred_check_branch
        %173 = sbr.rel (%p171) target = $region28
      $region27: #{simple_nn_forward.1} parent=11 // pred_region
        _
      $region28: #{simple_nn_forward.1} parent=11 // pred_fallthru
        _
    $region12: #{simple_nn_forward.1} parent=5 // pred_fallthru
      _
    %p174 = scmp.lt.s32.totalorder %s11, 2
    // Predicated region
    $region29: #{simple_nn_forward.1} parent=5 // pred_check
      %p175 = pneg %p174
    $region30: #{simple_nn_forward.1} parent=5 // pred_check_branch
      %177 = sbr.rel (%p175) target = $region32
    $region31: #{simple_nn_forward.1} parent=5 // pred_region
      // Predicated region
      $region33: #{simple_nn_forward.1} parent=31 // pred_check
        %p178 = pneg %p31
      $region34: #{simple_nn_forward.1} parent=31 // pred_check_branch
        %180 = sbr.rel (%p178) target = $region36
      $region35: #{simple_nn_forward.1} parent=31 // pred_region
        %s181 = smul.u32 2, %s11
        %p182 = scmp.lt.s32.totalorder %s181, 3
        %s183 = scalar_select %p182, %s181, 3
        %s184 = smul.addr %s183, 7
        %s185 = smul.addr %s184, 8
        %s186 = scalar_lea.vmem %s0, %s185
        %s187 = smul.u32 2, %s11
      $region36: #{simple_nn_forward.1} parent=31 // pred_fallthru
        _
    $region32: #{simple_nn_forward.1} parent=5 // pred_fallthru
      _
    %p188 = scmp.le.s32.totalorder 1, %s11
    %p189 = scmp.lt.s32.totalorder %s11, 3
    %p190 = pnand %p188, %p189
    %p191 = pneg %p190
    // Predicated region
    $region37: #{simple_nn_forward.1} parent=5 // pred_check
      _
    $region38: #{simple_nn_forward.1} parent=5 // pred_check_branch
      %193 = sbr.rel (%p190) target = $region40
    $region39: #{simple_nn_forward.1} parent=5 // pred_region
      %s194 = ssub.s32 %s11, 1
      %s195 = smul.u32 2, %s16
      %p196 = scmp.lt.s32.totalorder %s195, 3
      %s197 = scalar_select %p196, %s195, 3
      %s198 = smul.addr %s197, 7
      %s199 = smul.addr %s198, 8
      %s200 = scalar_lea.vmem %s0, %s199
      %p201 = pneg %p37
      %p202 = pneg %p34
      %p203 = pneg %p58
      %p204 = pneg %p55
      %p205 = pneg %p79
      %p206 = pneg %p76
      %p207 = pneg %p100
      %p208 = pneg %p97
      %p209 = pneg %p121
      %p210 = pneg %p118
      %p211 = pneg %p147
      %p212 = pneg %p144
      %s213 = smul.u32 2, %s16
      %p214 = scmp.lt.s32.totalorder %s213, 3
      %s215 = scalar_select %p214, %s213, 3
      %s216 = smul.addr %s215, 4
      %s217 = scalar_lea.vmem %s5, %s216
      %s218 = smul.u32 2, %s16
      %p219 = scmp.lt.s32.totalorder %s218, 3
      %s220 = scalar_select %p219, %s218, 3
      %s221 = smul.addr %s220, 7
      %s222 = smul.addr %s221, 8
      %s223 = scalar_lea.vmem %s0, %s222
      %s224 = smul.u32 2, %s16
      %s225 = smul.u32 2, %s16
      %p226 = scmp.lt.s32.totalorder %s225, 3
      %s227 = scalar_select %p226, %s225, 3
      %s228 = smul.addr %s227, 4
      %s229 = scalar_lea.vmem %s5, %s228
      %s230 = smul.u32 2, %s16
      %v232 = vld [vmem:[%s223] sm:$0xff]
      %v233 = vld [vmem:[%s223 + $0x8] sm:$0xff]
      %v234 = vld [vmem:[%s223 + $0x10] sm:$0xff]
      %v235 = vld [vmem:[%s223 + $0x18] sm:$0xff]
      %v236 = vld [vmem:[%s223 + $0x20] sm:$0xff]
      %v237 = vld [vmem:[%s223 + $0x28] sm:$0xff]
      %v238 = vld [vmem:[%s223 + $0x30] sm:$0xff]
      %v239 = vld [vmem:[%s223 + $0x38] sm:$0xff]
      %v240 = vld [vmem:[%s223 + $0x40] sm:$0xff]
      %v241 = vld [vmem:[%s223 + $0x48] sm:$0xff]
      %v242 = vld [vmem:[%s223 + $0x50] sm:$0xff]
      %v243 = vld [vmem:[%s223 + $0x58] sm:$0xff]
      %v244 = vld [vmem:[%s223 + $0x60] sm:$0xff]
      %v245 = vld [vmem:[%s223 + $0x68] sm:$0xff]
      %v246 = vpack.c.bf16 %v239, %v232
      %v247 = vpack.c.bf16 %v240, %v233
      %v248 = vpack.c.bf16 %v241, %v234
      %v249 = vpack.c.bf16 %v242, %v235
      %v250 = vpack.c.bf16 %v243, %v236
      %v251 = vpack.c.bf16 %v244, %v237
      %v252 = vpack.c.bf16 %v245, %v238
      %v253 = vld [vmem:[%s1] sm:$0xf]
      %v254 = vld [vmem:[%s1 + $0x4] sm:$0xf]
      %v255 = vld [vmem:[%s1 + $0x8] sm:$0xf]
      %v256 = vld [vmem:[%s1 + $0xc] sm:$0xf]
      %v257 = vld [vmem:[%s1 + $0x10] sm:$0xf]
      %v258 = vld [vmem:[%s1 + $0x14] sm:$0xf]
      %v259 = vld [vmem:[%s1 + $0x18] sm:$0xf]
      %v260 = vld [vmem:[%s1 + $0x1c] sm:$0xf]
      %v261 = vld [vmem:[%s1 + $0x20] sm:$0xf]
      %v262 = vld [vmem:[%s1 + $0x24] sm:$0xf]
      %v263 = vld [vmem:[%s1 + $0x28] sm:$0xf]
      %v264 = vld [vmem:[%s1 + $0x2c] sm:$0xf]
      %v265 = vld [vmem:[%s1 + $0x30] sm:$0xf]
      %v266 = vld [vmem:[%s1 + $0x34] sm:$0xf]
      %v267 = vld [vmem:[%s1 + $0x38] sm:$0xf]
      %v268 = vld [vmem:[%s1 + $0x3c] sm:$0xf]
      %v269 = vld [vmem:[%s1 + $0x40] sm:$0xf]
      %v270 = vld [vmem:[%s1 + $0x44] sm:$0xf]
      %v271 = vld [vmem:[%s1 + $0x48] sm:$0xf]
      %v272 = vld [vmem:[%s1 + $0x4c] sm:$0xf]
      %v273 = vld [vmem:[%s1 + $0x50] sm:$0xf]
      %v274 = vld [vmem:[%s1 + $0x54] sm:$0xf]
      %v275 = vld [vmem:[%s1 + $0x58] sm:$0xf]
      %v276 = vld [vmem:[%s1 + $0x5c] sm:$0xf]
      %v277 = vld [vmem:[%s1 + $0x60] sm:$0xf]
      %v278 = vld [vmem:[%s1 + $0x64] sm:$0xf]
      %v279 = vld [vmem:[%s1 + $0x68] sm:$0xf]
      %v280 = vld [vmem:[%s1 + $0x6c] sm:$0xf]
      %v281 = vld [vmem:[%s1 + $0x70] sm:$0xf]
      %v282 = vld [vmem:[%s1 + $0x74] sm:$0xf]
      %v283 = vld [vmem:[%s1 + $0x78] sm:$0xf]
      %v284 = vld [vmem:[%s1 + $0x7c] sm:$0xf]
      %v285 = vld [vmem:[%s1 + $0x80] sm:$0xf]
      %v286 = vld [vmem:[%s1 + $0x84] sm:$0xf]
      %v287 = vld [vmem:[%s1 + $0x88] sm:$0xf]
      %v288 = vld [vmem:[%s1 + $0x8c] sm:$0xf]
      %v289 = vld [vmem:[%s1 + $0x90] sm:$0xf]
      %v290 = vld [vmem:[%s1 + $0x94] sm:$0xf]
      %v291 = vld [vmem:[%s1 + $0x98] sm:$0xf]
      %v292 = vld [vmem:[%s1 + $0x9c] sm:$0xf]
      %v293 = vld [vmem:[%s1 + $0xa0] sm:$0xf]
      %v294 = vld [vmem:[%s1 + $0xa4] sm:$0xf]
      %v295 = vld [vmem:[%s1 + $0xa8] sm:$0xf]
      %v296 = vld [vmem:[%s1 + $0xac] sm:$0xf]
      %v297 = vld [vmem:[%s1 + $0xb0] sm:$0xf]
      %v298 = vld [vmem:[%s1 + $0xb4] sm:$0xf]
      %v299 = vld [vmem:[%s1 + $0xb8] sm:$0xf]
      %v300 = vld [vmem:[%s1 + $0xbc] sm:$0xf]
      %v301 = vld [vmem:[%s1 + $0xc0] sm:$0xf]
      %v302 = vld [vmem:[%s1 + $0xc4] sm:$0xf]
      %v303 = vld [vmem:[%s1 + $0xc8] sm:$0xf]
      %v304 = vld [vmem:[%s1 + $0xcc] sm:$0xf]
      %v305 = vld [vmem:[%s1 + $0xd0] sm:$0xf]
      %v306 = vld [vmem:[%s1 + $0xd4] sm:$0xf]
      %v307 = vld [vmem:[%s1 + $0xd8] sm:$0xf]
      %v308 = vld [vmem:[%s1 + $0xdc] sm:$0xf]
      %v309 = vld [vmem:[%s1 + $0xe0] sm:$0xf]
      %v310 = vld [vmem:[%s1 + $0xe4] sm:$0xf]
      %v311 = vld [vmem:[%s1 + $0xe8] sm:$0xf]
      %v312 = vld [vmem:[%s1 + $0xec] sm:$0xf]
      %v313 = vld [vmem:[%s1 + $0xf0] sm:$0xf]
      %v314 = vld [vmem:[%s1 + $0xf4] sm:$0xf]
      %v315 = vld [vmem:[%s1 + $0xf8] sm:$0xf]
      %v316 = vld [vmem:[%s1 + $0xfc] sm:$0xf]
      %v317 = vld [vmem:[%s1 + $0x100] sm:$0xf]
      %v318 = vld [vmem:[%s1 + $0x104] sm:$0xf]
      %v319 = vld [vmem:[%s1 + $0x108] sm:$0xf]
      %v320 = vld [vmem:[%s1 + $0x10c] sm:$0xf]
      %v321 = vld [vmem:[%s1 + $0x110] sm:$0xf]
      %v322 = vld [vmem:[%s1 + $0x114] sm:$0xf]
      %v323 = vld [vmem:[%s1 + $0x118] sm:$0xf]
      %v324 = vld [vmem:[%s1 + $0x11c] sm:$0xf]
      %v325 = vld [vmem:[%s1 + $0x120] sm:$0xf]
      %v326 = vld [vmem:[%s1 + $0x124] sm:$0xf]
      %v327 = vld [vmem:[%s1 + $0x128] sm:$0xf]
      %v328 = vld [vmem:[%s1 + $0x12c] sm:$0xf]
      %v329 = vld [vmem:[%s1 + $0x130] sm:$0xf]
      %v330 = vld [vmem:[%s1 + $0x134] sm:$0xf]
      %v331 = vld [vmem:[%s1 + $0x138] sm:$0xf]
      %v332 = vld [vmem:[%s1 + $0x13c] sm:$0xf]
      %v333 = vld [vmem:[%s1 + $0x140] sm:$0xf]
      %v334 = vld [vmem:[%s1 + $0x144] sm:$0xf]
      %v335 = vld [vmem:[%s1 + $0x148] sm:$0xf]
      %v336 = vld [vmem:[%s1 + $0x14c] sm:$0xf]
      %v337 = vld [vmem:[%s1 + $0x150] sm:$0xf]
      %v338 = vld [vmem:[%s1 + $0x154] sm:$0xf]
      %v339 = vld [vmem:[%s1 + $0x158] sm:$0xf]
      %v340 = vld [vmem:[%s1 + $0x15c] sm:$0xf]
      %v341 = vld [vmem:[%s1 + $0x160] sm:$0xf]
      %v342 = vld [vmem:[%s1 + $0x164] sm:$0xf]
      %v343 = vld [vmem:[%s1 + $0x168] sm:$0xf]
      %v344 = vld [vmem:[%s1 + $0x16c] sm:$0xf]
      %v345 = vld [vmem:[%s1 + $0x170] sm:$0xf]
      %v346 = vld [vmem:[%s1 + $0x174] sm:$0xf]
      %v347 = vld [vmem:[%s1 + $0x178] sm:$0xf]
      %v348 = vld [vmem:[%s1 + $0x17c] sm:$0xf]
      %v349 = vld [vmem:[%s1 + $0x180] sm:$0xf]
      %v350 = vld [vmem:[%s1 + $0x184] sm:$0xf]
      %v351 = vld [vmem:[%s2] sm:$0x1]
      %v353 = vperm.slane %v351, 0
      %v453 = vunpack.c.l.b16 %v253
      %v454 = vunpack.c.l.b16 %v254
      %v455 = vunpack.c.l.b16 %v255
      %v456 = vunpack.c.l.b16 %v256
      %v457 = vunpack.c.l.b16 %v257
      %v458 = vunpack.c.l.b16 %v258
      %v459 = vunpack.c.l.b16 %v259
      %v460 = vunpack.c.l.b16 %v260
      %v461 = vunpack.c.l.b16 %v261
      %v462 = vunpack.c.l.b16 %v262
      %v463 = vunpack.c.l.b16 %v263
      %v464 = vunpack.c.l.b16 %v264
      %v465 = vunpack.c.l.b16 %v265
      %v466 = vunpack.c.l.b16 %v266
      %v467 = vunpack.c.l.b16 %v267
      %v468 = vunpack.c.l.b16 %v268
      %v469 = vunpack.c.l.b16 %v269
      %v470 = vunpack.c.l.b16 %v270
      %v471 = vunpack.c.l.b16 %v271
      %v472 = vunpack.c.l.b16 %v272
      %v473 = vunpack.c.l.b16 %v273
      %v474 = vunpack.c.l.b16 %v274
      %v475 = vunpack.c.l.b16 %v275
      %v476 = vunpack.c.l.b16 %v276
      %v477 = vunpack.c.l.b16 %v277
      %v478 = vunpack.c.l.b16 %v278
      %v479 = vunpack.c.l.b16 %v279
      %v480 = vunpack.c.l.b16 %v280
      %v481 = vunpack.c.l.b16 %v281
      %v482 = vunpack.c.l.b16 %v282
      %v483 = vunpack.c.l.b16 %v283
      %v484 = vunpack.c.l.b16 %v284
      %v485 = vunpack.c.l.b16 %v285
      %v486 = vunpack.c.l.b16 %v286
      %v487 = vunpack.c.l.b16 %v287
      %v488 = vunpack.c.l.b16 %v288
      %v489 = vunpack.c.l.b16 %v289
      %v490 = vunpack.c.l.b16 %v290
      %v491 = vunpack.c.l.b16 %v291
      %v492 = vunpack.c.l.b16 %v292
      %v493 = vunpack.c.l.b16 %v293
      %v494 = vunpack.c.l.b16 %v294
      %v495 = vunpack.c.l.b16 %v295
      %v496 = vunpack.c.l.b16 %v296
      %v497 = vunpack.c.l.b16 %v297
      %v498 = vunpack.c.l.b16 %v298
      %v499 = vunpack.c.l.b16 %v299
      %v500 = vunpack.c.l.b16 %v300
      %v501 = vunpack.c.l.b16 %v301
      %v502 = vunpack.c.l.b16 %v302
      %v503 = vunpack.c.l.b16 %v303
      %v504 = vunpack.c.l.b16 %v304
      %v505 = vunpack.c.l.b16 %v305
      %v506 = vunpack.c.l.b16 %v306
      %v507 = vunpack.c.l.b16 %v307
      %v508 = vunpack.c.l.b16 %v308
      %v509 = vunpack.c.l.b16 %v309
      %v510 = vunpack.c.l.b16 %v310
      %v511 = vunpack.c.l.b16 %v311
      %v512 = vunpack.c.l.b16 %v312
      %v513 = vunpack.c.l.b16 %v313
      %v514 = vunpack.c.l.b16 %v314
      %v515 = vunpack.c.l.b16 %v315
      %v516 = vunpack.c.l.b16 %v316
      %v517 = vunpack.c.l.b16 %v317
      %v518 = vunpack.c.l.b16 %v318
      %v519 = vunpack.c.l.b16 %v319
      %v520 = vunpack.c.l.b16 %v320
      %v521 = vunpack.c.l.b16 %v321
      %v522 = vunpack.c.l.b16 %v322
      %v523 = vunpack.c.l.b16 %v323
      %v524 = vunpack.c.l.b16 %v324
      %v525 = vunpack.c.l.b16 %v325
      %v526 = vunpack.c.l.b16 %v326
      %v527 = vunpack.c.l.b16 %v327
      %v528 = vunpack.c.l.b16 %v328
      %v529 = vunpack.c.l.b16 %v329
      %v530 = vunpack.c.l.b16 %v330
      %v531 = vunpack.c.l.b16 %v331
      %v532 = vunpack.c.l.b16 %v332
      %v533 = vunpack.c.l.b16 %v333
      %v534 = vunpack.c.l.b16 %v334
      %v535 = vunpack.c.l.b16 %v335
      %v536 = vunpack.c.l.b16 %v336
      %v537 = vunpack.c.l.b16 %v337
      %v538 = vunpack.c.l.b16 %v338
      %v539 = vunpack.c.l.b16 %v339
      %v540 = vunpack.c.l.b16 %v340
      %v541 = vunpack.c.l.b16 %v341
      %v542 = vunpack.c.l.b16 %v342
      %v543 = vunpack.c.l.b16 %v343
      %v544 = vunpack.c.l.b16 %v344
      %v545 = vunpack.c.l.b16 %v345
      %v546 = vunpack.c.l.b16 %v346
      %v547 = vunpack.c.l.b16 %v347
      %v548 = vunpack.c.l.b16 %v348
      %v549 = vunpack.c.l.b16 %v349
      %v550 = vunpack.c.l.b16 %v350
      %v551 = vpack.c.b16 %v454, %v453
      %v552 = vpack.c.b16 %v456, %v455
      %v553 = vpack.c.b16 %v458, %v457
      %v554 = vpack.c.b16 %v460, %v459
      %v555 = vpack.c.b16 %v462, %v461
      %v556 = vpack.c.b16 %v464, %v463
      %v557 = vpack.c.b16 %v466, %v465
      %v558 = vpack.c.b16 %v468, %v467
      %v559 = vpack.c.b16 %v470, %v469
      %v560 = vpack.c.b16 %v472, %v471
      %v561 = vpack.c.b16 %v474, %v473
      %v562 = vpack.c.b16 %v476, %v475
      %v563 = vpack.c.b16 %v478, %v477
      %v564 = vpack.c.b16 %v480, %v479
      %v565 = vpack.c.b16 %v482, %v481
      %v566 = vpack.c.b16 %v484, %v483
      %v567 = vpack.c.b16 %v486, %v485
      %v568 = vpack.c.b16 %v488, %v487
      %v569 = vpack.c.b16 %v490, %v489
      %v570 = vpack.c.b16 %v492, %v491
      %v571 = vpack.c.b16 %v494, %v493
      %v572 = vpack.c.b16 %v496, %v495
      %v573 = vpack.c.b16 %v498, %v497
      %v574 = vpack.c.b16 %v500, %v499
      %v575 = vpack.c.b16 %v502, %v501
      %v576 = vpack.c.b16 %v504, %v503
      %v577 = vpack.c.b16 %v506, %v505
      %v578 = vpack.c.b16 %v508, %v507
      %v579 = vpack.c.b16 %v510, %v509
      %v580 = vpack.c.b16 %v512, %v511
      %v581 = vpack.c.b16 %v514, %v513
      %v582 = vpack.c.b16 %v516, %v515
      %v583 = vpack.c.b16 %v518, %v517
      %v584 = vpack.c.b16 %v520, %v519
      %v585 = vpack.c.b16 %v522, %v521
      %v586 = vpack.c.b16 %v524, %v523
      %v587 = vpack.c.b16 %v526, %v525
      %v588 = vpack.c.b16 %v528, %v527
      %v589 = vpack.c.b16 %v530, %v529
      %v590 = vpack.c.b16 %v532, %v531
      %v591 = vpack.c.b16 %v534, %v533
      %v592 = vpack.c.b16 %v536, %v535
      %v593 = vpack.c.b16 %v538, %v537
      %v594 = vpack.c.b16 %v540, %v539
      %v595 = vpack.c.b16 %v542, %v541
      %v596 = vpack.c.b16 %v544, %v543
      %v597 = vpack.c.b16 %v546, %v545
      %v598 = vpack.c.b16 %v548, %v547
      %v599 = vpack.c.b16 %v550, %v549
      %vm649 = vcmask 130048
      %v651 = vsel %vm649, %v252, 0
      %653 = vmatpush.bf16.msra.mxu0 %v558
      %654 = vmatpush.bf16.msra.mxu0 %v557
      %655 = vmatpush.bf16.msra.mxu0 %v556
      %656 = vmatpush.bf16.msra.mxu0 %v555
      %657 = vmatpush.bf16.msra.mxu0 %v554
      %658 = vmatpush.bf16.msra.mxu0 %v553
      %659 = vmatpush.bf16.msra.mxu0 %v552
      %660 = vmatpush.bf16.msra.mxu0 %v551
      %661 = vmatmul.bf16.gmra.mxu0 %v246
      %v662 = vpop.f32.mrf.mxu0
      %v663 = vadd.f32 %v353, %v662
      %v664 = vpop.f32.mrf.mxu0
      %v665 = vadd.f32 %v353, %v664
      %666 = vdwg.mxu0
      %667 = vmatpush.bf16.msra.mxu0 %v566
      %668 = vmatpush.bf16.msra.mxu0 %v565
      %669 = vmatpush.bf16.msra.mxu0 %v564
      %670 = vmatpush.bf16.msra.mxu0 %v563
      %671 = vmatpush.bf16.msra.mxu0 %v562
      %672 = vmatpush.bf16.msra.mxu0 %v561
      %673 = vmatpush.bf16.msra.mxu0 %v560
      %674 = vmatpush.bf16.msra.mxu0 %v559
      %675 = vmatmul.bf16.gmra.mxu0 %v247
      %v676 = vpop.f32.mrf.mxu0
      %v677 = vadd.f32 %v663, %v676
      %v678 = vpop.f32.mrf.mxu0
      %v679 = vadd.f32 %v665, %v678
      %680 = vdwg.mxu0
      %681 = vmatpush.bf16.msra.mxu0 %v574
      %682 = vmatpush.bf16.msra.mxu0 %v573
      %683 = vmatpush.bf16.msra.mxu0 %v572
      %684 = vmatpush.bf16.msra.mxu0 %v571
      %685 = vmatpush.bf16.msra.mxu0 %v570
      %686 = vmatpush.bf16.msra.mxu0 %v569
      %687 = vmatpush.bf16.msra.mxu0 %v568
      %688 = vmatpush.bf16.msra.mxu0 %v567
      %689 = vmatmul.bf16.gmra.mxu0 %v248
      %v690 = vpop.f32.mrf.mxu0
      %v691 = vadd.f32 %v677, %v690
      %v692 = vpop.f32.mrf.mxu0
      %v693 = vadd.f32 %v679, %v692
      %694 = vdwg.mxu0
      %695 = vmatpush.bf16.msra.mxu0 %v582
      %696 = vmatpush.bf16.msra.mxu0 %v581
      %697 = vmatpush.bf16.msra.mxu0 %v580
      %698 = vmatpush.bf16.msra.mxu0 %v579
      %699 = vmatpush.bf16.msra.mxu0 %v578
      %700 = vmatpush.bf16.msra.mxu0 %v577
      %701 = vmatpush.bf16.msra.mxu0 %v576
      %702 = vmatpush.bf16.msra.mxu0 %v575
      %703 = vmatmul.bf16.gmra.mxu0 %v249
      %v704 = vpop.f32.mrf.mxu0
      %v705 = vadd.f32 %v691, %v704
      %v706 = vpop.f32.mrf.mxu0
      %v707 = vadd.f32 %v693, %v706
      %708 = vdwg.mxu0
      %709 = vmatpush.bf16.msra.mxu0 %v590
      %710 = vmatpush.bf16.msra.mxu0 %v589
      %711 = vmatpush.bf16.msra.mxu0 %v588
      %712 = vmatpush.bf16.msra.mxu0 %v587
      %713 = vmatpush.bf16.msra.mxu0 %v586
      %714 = vmatpush.bf16.msra.mxu0 %v585
      %715 = vmatpush.bf16.msra.mxu0 %v584
      %716 = vmatpush.bf16.msra.mxu0 %v583
      %717 = vmatmul.bf16.gmra.mxu0 %v250
      %v718 = vpop.f32.mrf.mxu0
      %v719 = vadd.f32 %v705, %v718
      %v720 = vpop.f32.mrf.mxu0
      %v721 = vadd.f32 %v707, %v720
      %722 = vdwg.mxu0
      %723 = vmatpush.bf16.msra.mxu0 %v598
      %724 = vmatpush.bf16.msra.mxu0 %v597
      %725 = vmatpush.bf16.msra.mxu0 %v596
      %726 = vmatpush.bf16.msra.mxu0 %v595
      %727 = vmatpush.bf16.msra.mxu0 %v594
      %728 = vmatpush.bf16.msra.mxu0 %v593
      %729 = vmatpush.bf16.msra.mxu0 %v592
      %730 = vmatpush.bf16.msra.mxu0 %v591
      %731 = vmatmul.bf16.gmra.mxu0 %v251
      %v732 = vpop.f32.mrf.mxu0
      %v733 = vadd.f32 %v719, %v732
      %v734 = vpop.f32.mrf.mxu0
      %v735 = vadd.f32 %v721, %v734
      %736 = vdwg.mxu0
      %737 = vmatpush.bf16.msra.mxu0 0
      %738 = vmatpush.bf16.msra.mxu0 0
      %739 = vmatpush.bf16.msra.mxu0 0
      %740 = vmatpush.bf16.msra.mxu0 0
      %741 = vmatpush.bf16.msra.mxu0 0
      %742 = vmatpush.bf16.msra.mxu0 0
      %743 = vmatpush.bf16.msra.mxu0 0
      %744 = vmatpush.bf16.msra.mxu0 %v599
      %745 = vmatmul.bf16.gmra.mxu0 %v651
      %v746 = vpop.f32.mrf.mxu0
      %v747 = vadd.f32 %v733, %v746
      %v748 = vpop.f32.mrf.mxu0
      %v749 = vadd.f32 %v735, %v748
      %750 = vdwg.mxu0
      %v751 = vmax.f32 %v747, 0.0
      %v752 = vmax.f32 %v749, 0.0
      %v753 = vpack.c.bf16 %v752, %v751
      %v754 = vld [vmem:[%s3] sm:$0xf]
      %v755 = vld [vmem:[%s3 + $0x4] sm:$0xf]
      %v756 = vld [vmem:[%s3 + $0x8] sm:$0xf]
      %v757 = vld [vmem:[%s3 + $0xc] sm:$0xf]
      %v758 = vld [vmem:[%s3 + $0x10] sm:$0xf]
      %v759 = vld [vmem:[%s3 + $0x14] sm:$0xf]
      %v760 = vld [vmem:[%s3 + $0x18] sm:$0xf]
      %v761 = vld [vmem:[%s3 + $0x1c] sm:$0xf]
      %v762 = vld [vmem:[%s3 + $0x20] sm:$0xf]
      %v763 = vld [vmem:[%s3 + $0x24] sm:$0xf]
      %v764 = vld [vmem:[%s3 + $0x28] sm:$0xf]
      %v765 = vld [vmem:[%s3 + $0x2c] sm:$0xf]
      %v766 = vld [vmem:[%s3 + $0x30] sm:$0xf]
      %v767 = vld [vmem:[%s3 + $0x34] sm:$0xf]
      %v768 = vld [vmem:[%s3 + $0x38] sm:$0xf]
      %v769 = vld [vmem:[%s3 + $0x3c] sm:$0xf]
      %v770 = vld [vmem:[%s4] sm:$0x1]
      %v772 = vperm.slane %v770, 0
      %v790 = vunpack.c.l.b16 %v754
      %v791 = vunpack.c.l.b16 %v755
      %v792 = vunpack.c.l.b16 %v756
      %v793 = vunpack.c.l.b16 %v757
      %v794 = vunpack.c.l.b16 %v758
      %v795 = vunpack.c.l.b16 %v759
      %v796 = vunpack.c.l.b16 %v760
      %v797 = vunpack.c.l.b16 %v761
      %v798 = vunpack.c.l.b16 %v762
      %v799 = vunpack.c.l.b16 %v763
      %v800 = vunpack.c.l.b16 %v764
      %v801 = vunpack.c.l.b16 %v765
      %v802 = vunpack.c.l.b16 %v766
      %v803 = vunpack.c.l.b16 %v767
      %v804 = vunpack.c.l.b16 %v768
      %v805 = vunpack.c.l.b16 %v769
      %v806 = vpack.c.b16 %v791, %v790
      %v807 = vpack.c.b16 %v793, %v792
      %v808 = vpack.c.b16 %v795, %v794
      %v809 = vpack.c.b16 %v797, %v796
      %v810 = vpack.c.b16 %v799, %v798
      %v811 = vpack.c.b16 %v801, %v800
      %v812 = vpack.c.b16 %v803, %v802
      %v813 = vpack.c.b16 %v805, %v804
      %822 = vmatpush.bf16.msra.mxu0 %v813
      %823 = vmatpush.bf16.msra.mxu0 %v812
      %824 = vmatpush.bf16.msra.mxu0 %v811
      %825 = vmatpush.bf16.msra.mxu0 %v810
      %826 = vmatpush.bf16.msra.mxu0 %v809
      %827 = vmatpush.bf16.msra.mxu0 %v808
      %828 = vmatpush.bf16.msra.mxu0 %v807
      %829 = vmatpush.bf16.msra.mxu0 %v806
      %830 = vmatmul.bf16.gmra.mxu0 %v753
      %v831 = vpop.f32.mrf.mxu0
      %v832 = vadd.f32 %v772, %v831
      %v833 = vpop.f32.mrf.mxu0
      %v834 = vadd.f32 %v772, %v833
      %835 = vdwg.mxu0
      %v836 = vpack.c.bf16 %v832, %v832
      %v837 = vpack.c.bf16 %v834, %v834
      %838 = vst [vmem:[%s229] sm:$0xf] %v836
      %839 = vst [vmem:[%s229 + $0x4] sm:$0xf] %v837
      %s840 = smul.u32 2, %s16
      %p841 = scmp.lt.s32.totalorder %s840, 3
      %s842 = scalar_select %p841, %s840, 3
      %s843 = smul.addr %s842, 4
      %s844 = scalar_lea.vmem %s5, %s843
      // Predicated region
      $region41: #{simple_nn_forward.1} parent=39 // pred_check
        %p845 = pneg %p144
      $region42: #{simple_nn_forward.1} parent=39 // pred_check_branch
        %847 = sbr.rel (%p845) target = $region44
      $region43: #{simple_nn_forward.1} parent=39 // pred_region
        %s848 = smul.u32 2, %s16
      $region44: #{simple_nn_forward.1} parent=39 // pred_fallthru
        _
    $region40: #{simple_nn_forward.1} parent=5 // pred_fallthru
      _
    %p849 = scmp.le.s32.totalorder 2, %s11
    // Predicated region
    $region45: #{simple_nn_forward.1} parent=5 // pred_check
      %p850 = pneg %p849
    $region46: #{simple_nn_forward.1} parent=5 // pred_check_branch
      %852 = sbr.rel (%p850) target = $region48
    $region47: #{simple_nn_forward.1} parent=5 // pred_region
      %s853 = ssub.s32 %s11, 2
      // Predicated region
      $region49: #{simple_nn_forward.1} parent=47 // pred_check
        %p854 = pneg %p150
      $region50: #{simple_nn_forward.1} parent=47 // pred_check_branch
        %856 = sbr.rel (%p854) target = $region52
      $region51: #{simple_nn_forward.1} parent=47 // pred_region
        %s857 = smul.u32 2, %s17
        %p858 = scmp.lt.s32.totalorder %s857, 3
        %s859 = scalar_select %p858, %s857, 3
        %s860 = smul.addr %s859, 4
        %s861 = scalar_lea.vmem %s5, %s860
      $region52: #{simple_nn_forward.1} parent=47 // pred_fallthru
        _
    $region48: #{simple_nn_forward.1} parent=5 // pred_fallthru
      _
  $region6: #{simple_nn_forward.1} parent=0 // loop_footer
    %s15 = sadd.s32 1, %s11
  $region7: #{simple_nn_forward.1} parent=0 // loop_footer_branch
    %10 = sbr.rel target = $region3
  $region8: #{simple_nn_forward.1} parent=0 // loop_exit
    _

</llo_original>
